<compile_context>
chip_gen: v7x
topology: tpu7x:2x2x1
jax: 0.10.0
libtpu: 0.0.40
codegen_flags: <defaults>
</compile_context>

<pallas_src>
import jax
import jax.numpy as jnp
from jax.experimental import pallas as pl
from jax.experimental.pallas import tpu as pltpu

IN_FEATURES = 768
OUT_FEATURES = 2


def _round_up(x, m):
    return ((x + m - 1) // m) * m


def _cdiv(a, b):
    return (a + b - 1) // b


def _fc_kernel(x_ref, w_ref, o_ref):
    # x_ref: (TB, 768) VMEM (streamed over batch tiles)
    # w_ref: (768, 2)  VMEM (resident, already bf16)
    # o_ref: (TB, 2)   VMEM (f32 accumulator output)
    # Dropout (eval mode) is identity. Cast to bf16 at the dot -> single MXU
    # pass (no f32 decomposition); accumulate in f32.
    x = x_ref[...].astype(jnp.bfloat16)
    w = w_ref[...].astype(jnp.bfloat16)
    o_ref[...] = jnp.dot(x, w, preferred_element_type=jnp.float32)


def fully_connected_forward(h_pooled, w_t, bias, *, block_rows=2048):
    """h_pooled: [B, 768], w_t: [768, 2], bias: [2] -> [B, 2].

    block_rows: target batch-tile size (2048 default is safe on all TPU
    generations with the explicit 48 MiB vmem limit; sweep up to 4096 on
    v6e/v7x). The actual tile is balanced across >=2 grid steps when B
    allows, so v7x's two TensorCores are both used.
    """
    B, K = h_pooled.shape
    assert K == IN_FEATURES
    N = w_t.shape[1]
    dtype = h_pooled.dtype

    # f32 packs 8 rows per sublane tile; bf16 packs 16.
    sublane = 16 if dtype == jnp.bfloat16 else 8

    # Adaptive, balanced tiles: bound zero-pad waste to < 1 sublane tile per
    # step and use >=2 tiles whenever B is large enough (v7x megacore).
    max_tiles = max(1, B // sublane)
    n_tiles = min(max(_cdiv(B, block_rows), 2), max_tiles)
    tb = _round_up(_cdiv(B, n_tiles), sublane)
    b_pad = _round_up(B, tb)
    grid_b = b_pad // tb

    x = h_pooled
    if b_pad != B:
        x = jnp.pad(x, ((0, b_pad - B), (0, 0)))

    # Weight is tiny and resident in VMEM; pre-cast to bf16 (single MXU pass,
    # half the resident-buffer bytes).
    w_bf16 = w_t.astype(jnp.bfloat16)

    out = pl.pallas_call(
        _fc_kernel,
        out_shape=jax.ShapeDtypeStruct((b_pad, N), jnp.float32),
        grid=(grid_b,),
        in_specs=[
            pl.BlockSpec((tb, K), lambda i: (i, 0)),   # stream x over batch tiles
            pl.BlockSpec((K, N), lambda i: (0, 0)),    # weight: resident in VMEM
        ],
        out_specs=pl.BlockSpec((tb, N), lambda i: (i, 0)),
        compiler_params=pltpu.CompilerParams(
            dimension_semantics=("parallel",),          # independent batch tiles
            vmem_limit_bytes=48 * 1024 * 1024,          # headroom for tb up to ~4096
        ),
    )(x, w_bf16)

    if b_pad != B:
        out = out[:B]
    # Fold bias (and final dtype cast) in the wrapper: out is only [B, 2],
    # so this is negligible traffic and removes a VMEM bias buffer.
    return (out + bias.astype(jnp.float32)[None, :]).astype(dtype)


def init_params(key):
    """Deterministic init mimicking nn.Linear(768, 2) default init ranges."""
    k_w, k_b = jax.random.split(key)
    bound = 1.0 / jnp.sqrt(jnp.float32(IN_FEATURES))
    # PyTorch stores weight as (out, in); we keep it as (in, out) = W^T.
    w_t = jax.random.uniform(
        k_w, (IN_FEATURES, OUT_FEATURES), jnp.float32, -bound, bound
    )
    bias = jax.random.uniform(
        k_b, (OUT_FEATURES,), jnp.float32, -bound, bound
    )
    return w_t, bias


if __name__ == "__main__":
    key = jax.random.PRNGKey(0)
    k_x, k_p = jax.random.split(key)

    B = 8  # small smoke-test batch (kernel tiles/splits automatically for large B)
    h_pooled = jax.random.normal(k_x, (B, IN_FEATURES), jnp.float32)
    w_t, bias = init_params(k_p)

    out = fully_connected_forward(h_pooled, w_t, bias)
    out = jax.block_until_ready(out)

    assert out.shape == (B, OUT_FEATURES)
    assert out.dtype == h_pooled.dtype

    # Exact-path reference: same bf16 operands, f32 accumulation.
    ref_bf16 = (
        jnp.dot(
            h_pooled.astype(jnp.bfloat16),
            w_t.astype(jnp.bfloat16),
            preferred_element_type=jnp.float32,
        )
        + bias[None, :]
    )
    assert jnp.allclose(out, ref_bf16, atol=1e-4, rtol=1e-4)

    # Loose check vs the full-f32 reference (bf16 rounding tolerance).
    ref_f32 = h_pooled @ w_t + bias[None, :]
    assert jnp.allclose(out, ref_f32, atol=5e-2, rtol=5e-2)

    print("KERNEL_OK")
</pallas_src>

<mosaic_0001>
module attributes {stable_mosaic.version = 11 : i64} {
  func.func @_fc_kernel(%arg0: i32, %arg1: memref<8x768xf32, #tpu.memory_space<vmem>>, %arg2: memref<768x2xbf16, #tpu.memory_space<vmem>>, %arg3: memref<8x2xf32, #tpu.memory_space<vmem>>) attributes {dimension_semantics = [#tpu.dimension_semantics<parallel>], iteration_bounds = array<i64: 1>, scalar_prefetch = 0 : i64, scratch_operands = 0 : i64, tpu.core_type = #tpu.core_type<tc>, window_params = [{transform_indices = @transform_0, window_bounds = array<i64: 8, 768>}, {pipeline_mode = #tpu.pipeline_mode<synchronous>, transform_indices = @transform_1, window_bounds = array<i64: 768, 2>}, {transform_indices = @transform_2, window_bounds = array<i64: 8, 2>}]} {
    %c0 = arith.constant 0 : index
    %c0_0 = arith.constant 0 : index
    %0 = vector.load %arg1[%c0, %c0_0] : memref<8x768xf32, #tpu.memory_space<vmem>>, vector<8x768xf32>
    %1 = arith.truncf %0 : vector<8x768xf32> to vector<8x768xbf16>
    %c0_1 = arith.constant 0 : index
    %c0_2 = arith.constant 0 : index
    %2 = vector.load %arg2[%c0_1, %c0_2] : memref<768x2xbf16, #tpu.memory_space<vmem>>, vector<768x2xbf16>
    %cst = arith.constant dense<0.000000e+00> : vector<8x2xf32>
    %3 = tpu.matmul %1, %2, %cst {dimension_numbers = #tpu.dot_dimension_numbers<[1], [0], [0], [1], [0, 0, 1, 1], [], []>} : vector<8x768xbf16>, vector<768x2xbf16>, vector<8x2xf32> -> vector<8x2xf32>
    %c0_3 = arith.constant 0 : index
    %c0_4 = arith.constant 0 : index
    %4 = vector.load %arg3[%c0_3, %c0_4] : memref<8x2xf32, #tpu.memory_space<vmem>>, vector<8x2xf32>
    tpu.vector_store %arg3[%c0_3, %c0_4], %3 {strides = array<i32>} : memref<8x2xf32, #tpu.memory_space<vmem>>, vector<8x2xf32>,
    return
  }
  func.func @transform_0(%arg0: i32) -> (i32, i32) {
    %c0_i32 = arith.constant 0 : i32
    %c0_i32_0 = arith.constant 0 : i32
    return %arg0, %c0_i32 : i32, i32
  }
  func.func @transform_1(%arg0: i32) -> (i32, i32) {
    %c0_i32 = arith.constant 0 : i32
    %c0_i32_0 = arith.constant 0 : i32
    %c0_i32_1 = arith.constant 0 : i32
    return %c0_i32, %c0_i32_0 : i32, i32
  }
  func.func @transform_2(%arg0: i32) -> (i32, i32) {
    %c0_i32 = arith.constant 0 : i32
    %c0_i32_0 = arith.constant 0 : i32
    return %arg0, %c0_i32 : i32, i32
  }
}

</mosaic_0001>

<llo_original>
// kernel: tpu_custom_call.1
$region0: #{tpu_custom_call.1}
  #allocation0 [shape = 'u32[]', space=smem, size = 0x4, offset = 0x4, fixed_abs, tag = 'smem constant byte address 0x4 - core index']
  #allocation1 [shape = 'u32[144,128]{1,0:T(1,128)}', space=vmem, size = 0x12000, scoped, tag = 'internal scratch']
  %s0 = inlined_call_operand.vmem [shape: f32[8,768], index: 0, kind: input, shape index: {}]
  %s1 = inlined_call_operand.vmem [shape: bf16[768,2], index: 1, kind: input, shape index: {}]
  %s2 = inlined_call_operand.vmem [shape: f32[8,2], index: 2, kind: output, shape index: {}]
  %s3 = sld [smem:[#allocation0]]
  $region18: #{tpu_custom_call.1} parent=0
    _
  %s5 = ssub.s32 1, %s3
  %s6 = scalar_select 0, %s5, %s3
  // Predicated region
  $region2: #{tpu_custom_call.1} parent=0 // pred_check
    _
  $region3: #{tpu_custom_call.1} parent=0 // pred_check_branch
    %8 = sbr.rel (0) target = $region5
  $region4: #{tpu_custom_call.1} parent=0 // pred_region
    _
  $region5: #{tpu_custom_call.1} parent=0 // pred_fallthru
    _
  // Predicated region
  $region6: #{tpu_custom_call.1} parent=0 // pred_check
    _
  $region7: #{tpu_custom_call.1} parent=0 // pred_check_branch
    %10 = sbr.rel (0) target = $region9
  $region8: #{tpu_custom_call.1} parent=0 // pred_region
    _
  $region9: #{tpu_custom_call.1} parent=0 // pred_fallthru
    _
  %v12 = vld [vmem:[%s0] sm:$0xff]
  %v13 = vld [vmem:[%s0 + $0x8] sm:$0xff]
  %v14 = vld [vmem:[%s0 + $0x10] sm:$0xff]
  %v15 = vld [vmem:[%s0 + $0x18] sm:$0xff]
  %v16 = vld [vmem:[%s0 + $0x20] sm:$0xff]
  %v17 = vld [vmem:[%s0 + $0x28] sm:$0xff]
  %v18 = vpack.c.bf16 %v12, %v12
  %v19 = vpack.c.bf16 %v13, %v13
  %v20 = vpack.c.bf16 %v14, %v14
  %v21 = vpack.c.bf16 %v15, %v15
  %v22 = vpack.c.bf16 %v16, %v16
  %v23 = vpack.c.bf16 %v17, %v17
  %v24 = vld [vmem:[%s1] sm:$0xf]
  %v25 = vld [vmem:[%s1 + $0x4] sm:$0xf]
  %v26 = vld [vmem:[%s1 + $0x8] sm:$0xf]
  %v27 = vld [vmem:[%s1 + $0xc] sm:$0xf]
  %v28 = vld [vmem:[%s1 + $0x10] sm:$0xf]
  %v29 = vld [vmem:[%s1 + $0x14] sm:$0xf]
  %v30 = vld [vmem:[%s1 + $0x18] sm:$0xf]
  %v31 = vld [vmem:[%s1 + $0x1c] sm:$0xf]
  %v32 = vld [vmem:[%s1 + $0x20] sm:$0xf]
  %v33 = vld [vmem:[%s1 + $0x24] sm:$0xf]
  %v34 = vld [vmem:[%s1 + $0x28] sm:$0xf]
  %v35 = vld [vmem:[%s1 + $0x2c] sm:$0xf]
  %v36 = vld [vmem:[%s1 + $0x30] sm:$0xf]
  %v37 = vld [vmem:[%s1 + $0x34] sm:$0xf]
  %v38 = vld [vmem:[%s1 + $0x38] sm:$0xf]
  %v39 = vld [vmem:[%s1 + $0x3c] sm:$0xf]
  %v40 = vld [vmem:[%s1 + $0x40] sm:$0xf]
  %v41 = vld [vmem:[%s1 + $0x44] sm:$0xf]
  %v42 = vld [vmem:[%s1 + $0x48] sm:$0xf]
  %v43 = vld [vmem:[%s1 + $0x4c] sm:$0xf]
  %v44 = vld [vmem:[%s1 + $0x50] sm:$0xf]
  %v45 = vld [vmem:[%s1 + $0x54] sm:$0xf]
  %v46 = vld [vmem:[%s1 + $0x58] sm:$0xf]
  %v47 = vld [vmem:[%s1 + $0x5c] sm:$0xf]
  %v48 = vld [vmem:[%s1 + $0x60] sm:$0xf]
  %v49 = vld [vmem:[%s1 + $0x64] sm:$0xf]
  %v50 = vld [vmem:[%s1 + $0x68] sm:$0xf]
  %v51 = vld [vmem:[%s1 + $0x6c] sm:$0xf]
  %v52 = vld [vmem:[%s1 + $0x70] sm:$0xf]
  %v53 = vld [vmem:[%s1 + $0x74] sm:$0xf]
  %v54 = vld [vmem:[%s1 + $0x78] sm:$0xf]
  %v55 = vld [vmem:[%s1 + $0x7c] sm:$0xf]
  %v56 = vld [vmem:[%s1 + $0x80] sm:$0xf]
  %v57 = vld [vmem:[%s1 + $0x84] sm:$0xf]
  %v58 = vld [vmem:[%s1 + $0x88] sm:$0xf]
  %v59 = vld [vmem:[%s1 + $0x8c] sm:$0xf]
  %v60 = vld [vmem:[%s1 + $0x90] sm:$0xf]
  %v61 = vld [vmem:[%s1 + $0x94] sm:$0xf]
  %v62 = vld [vmem:[%s1 + $0x98] sm:$0xf]
  %v63 = vld [vmem:[%s1 + $0x9c] sm:$0xf]
  %v64 = vld [vmem:[%s1 + $0xa0] sm:$0xf]
  %v65 = vld [vmem:[%s1 + $0xa4] sm:$0xf]
  %v66 = vld [vmem:[%s1 + $0xa8] sm:$0xf]
  %v67 = vld [vmem:[%s1 + $0xac] sm:$0xf]
  %v68 = vld [vmem:[%s1 + $0xb0] sm:$0xf]
  %v69 = vld [vmem:[%s1 + $0xb4] sm:$0xf]
  %v70 = vld [vmem:[%s1 + $0xb8] sm:$0xf]
  %v71 = vld [vmem:[%s1 + $0xbc] sm:$0xf]
  %v72 = vld [vmem:[%s1 + $0xc0] sm:$0xf]
  %v73 = vld [vmem:[%s1 + $0xc4] sm:$0xf]
  %v74 = vld [vmem:[%s1 + $0xc8] sm:$0xf]
  %v75 = vld [vmem:[%s1 + $0xcc] sm:$0xf]
  %v76 = vld [vmem:[%s1 + $0xd0] sm:$0xf]
  %v77 = vld [vmem:[%s1 + $0xd4] sm:$0xf]
  %v78 = vld [vmem:[%s1 + $0xd8] sm:$0xf]
  %v79 = vld [vmem:[%s1 + $0xdc] sm:$0xf]
  %v80 = vld [vmem:[%s1 + $0xe0] sm:$0xf]
  %v81 = vld [vmem:[%s1 + $0xe4] sm:$0xf]
  %v82 = vld [vmem:[%s1 + $0xe8] sm:$0xf]
  %v83 = vld [vmem:[%s1 + $0xec] sm:$0xf]
  %v84 = vld [vmem:[%s1 + $0xf0] sm:$0xf]
  %v85 = vld [vmem:[%s1 + $0xf4] sm:$0xf]
  %v86 = vld [vmem:[%s1 + $0xf8] sm:$0xf]
  %v87 = vld [vmem:[%s1 + $0xfc] sm:$0xf]
  %v88 = vld [vmem:[%s1 + $0x100] sm:$0xf]
  %v89 = vld [vmem:[%s1 + $0x104] sm:$0xf]
  %v90 = vld [vmem:[%s1 + $0x108] sm:$0xf]
  %v91 = vld [vmem:[%s1 + $0x10c] sm:$0xf]
  %v92 = vld [vmem:[%s1 + $0x110] sm:$0xf]
  %v93 = vld [vmem:[%s1 + $0x114] sm:$0xf]
  %v94 = vld [vmem:[%s1 + $0x118] sm:$0xf]
  %v95 = vld [vmem:[%s1 + $0x11c] sm:$0xf]
  %v96 = vld [vmem:[%s1 + $0x120] sm:$0xf]
  %v97 = vld [vmem:[%s1 + $0x124] sm:$0xf]
  %v98 = vld [vmem:[%s1 + $0x128] sm:$0xf]
  %v99 = vld [vmem:[%s1 + $0x12c] sm:$0xf]
  %v100 = vld [vmem:[%s1 + $0x130] sm:$0xf]
  %v101 = vld [vmem:[%s1 + $0x134] sm:$0xf]
  %v102 = vld [vmem:[%s1 + $0x138] sm:$0xf]
  %v103 = vld [vmem:[%s1 + $0x13c] sm:$0xf]
  %v104 = vld [vmem:[%s1 + $0x140] sm:$0xf]
  %v105 = vld [vmem:[%s1 + $0x144] sm:$0xf]
  %v106 = vld [vmem:[%s1 + $0x148] sm:$0xf]
  %v107 = vld [vmem:[%s1 + $0x14c] sm:$0xf]
  %v108 = vld [vmem:[%s1 + $0x150] sm:$0xf]
  %v109 = vld [vmem:[%s1 + $0x154] sm:$0xf]
  %v110 = vld [vmem:[%s1 + $0x158] sm:$0xf]
  %v111 = vld [vmem:[%s1 + $0x15c] sm:$0xf]
  %v112 = vld [vmem:[%s1 + $0x160] sm:$0xf]
  %v113 = vld [vmem:[%s1 + $0x164] sm:$0xf]
  %v114 = vld [vmem:[%s1 + $0x168] sm:$0xf]
  %v115 = vld [vmem:[%s1 + $0x16c] sm:$0xf]
  %v116 = vld [vmem:[%s1 + $0x170] sm:$0xf]
  %v117 = vld [vmem:[%s1 + $0x174] sm:$0xf]
  %v118 = vld [vmem:[%s1 + $0x178] sm:$0xf]
  %v119 = vld [vmem:[%s1 + $0x17c] sm:$0xf]
  %v216 = vunpack.c.l.b16 %v24
  %v217 = vunpack.c.l.b16 %v25
  %v218 = vunpack.c.l.b16 %v26
  %v219 = vunpack.c.l.b16 %v27
  %v220 = vunpack.c.l.b16 %v28
  %v221 = vunpack.c.l.b16 %v29
  %v222 = vunpack.c.l.b16 %v30
  %v223 = vunpack.c.l.b16 %v31
  %v224 = vunpack.c.l.b16 %v32
  %v225 = vunpack.c.l.b16 %v33
  %v226 = vunpack.c.l.b16 %v34
  %v227 = vunpack.c.l.b16 %v35
  %v228 = vunpack.c.l.b16 %v36
  %v229 = vunpack.c.l.b16 %v37
  %v230 = vunpack.c.l.b16 %v38
  %v231 = vunpack.c.l.b16 %v39
  %v232 = vunpack.c.l.b16 %v40
  %v233 = vunpack.c.l.b16 %v41
  %v234 = vunpack.c.l.b16 %v42
  %v235 = vunpack.c.l.b16 %v43
  %v236 = vunpack.c.l.b16 %v44
  %v237 = vunpack.c.l.b16 %v45
  %v238 = vunpack.c.l.b16 %v46
  %v239 = vunpack.c.l.b16 %v47
  %v240 = vunpack.c.l.b16 %v48
  %v241 = vunpack.c.l.b16 %v49
  %v242 = vunpack.c.l.b16 %v50
  %v243 = vunpack.c.l.b16 %v51
  %v244 = vunpack.c.l.b16 %v52
  %v245 = vunpack.c.l.b16 %v53
  %v246 = vunpack.c.l.b16 %v54
  %v247 = vunpack.c.l.b16 %v55
  %v248 = vunpack.c.l.b16 %v56
  %v249 = vunpack.c.l.b16 %v57
  %v250 = vunpack.c.l.b16 %v58
  %v251 = vunpack.c.l.b16 %v59
  %v252 = vunpack.c.l.b16 %v60
  %v253 = vunpack.c.l.b16 %v61
  %v254 = vunpack.c.l.b16 %v62
  %v255 = vunpack.c.l.b16 %v63
  %v256 = vunpack.c.l.b16 %v64
  %v257 = vunpack.c.l.b16 %v65
  %v258 = vunpack.c.l.b16 %v66
  %v259 = vunpack.c.l.b16 %v67
  %v260 = vunpack.c.l.b16 %v68
  %v261 = vunpack.c.l.b16 %v69
  %v262 = vunpack.c.l.b16 %v70
  %v263 = vunpack.c.l.b16 %v71
  %v264 = vunpack.c.l.b16 %v72
  %v265 = vunpack.c.l.b16 %v73
  %v266 = vunpack.c.l.b16 %v74
  %v267 = vunpack.c.l.b16 %v75
  %v268 = vunpack.c.l.b16 %v76
  %v269 = vunpack.c.l.b16 %v77
  %v270 = vunpack.c.l.b16 %v78
  %v271 = vunpack.c.l.b16 %v79
  %v272 = vunpack.c.l.b16 %v80
  %v273 = vunpack.c.l.b16 %v81
  %v274 = vunpack.c.l.b16 %v82
  %v275 = vunpack.c.l.b16 %v83
  %v276 = vunpack.c.l.b16 %v84
  %v277 = vunpack.c.l.b16 %v85
  %v278 = vunpack.c.l.b16 %v86
  %v279 = vunpack.c.l.b16 %v87
  %v280 = vunpack.c.l.b16 %v88
  %v281 = vunpack.c.l.b16 %v89
  %v282 = vunpack.c.l.b16 %v90
  %v283 = vunpack.c.l.b16 %v91
  %v284 = vunpack.c.l.b16 %v92
  %v285 = vunpack.c.l.b16 %v93
  %v286 = vunpack.c.l.b16 %v94
  %v287 = vunpack.c.l.b16 %v95
  %v288 = vunpack.c.l.b16 %v96
  %v289 = vunpack.c.l.b16 %v97
  %v290 = vunpack.c.l.b16 %v98
  %v291 = vunpack.c.l.b16 %v99
  %v292 = vunpack.c.l.b16 %v100
  %v293 = vunpack.c.l.b16 %v101
  %v294 = vunpack.c.l.b16 %v102
  %v295 = vunpack.c.l.b16 %v103
  %v296 = vunpack.c.l.b16 %v104
  %v297 = vunpack.c.l.b16 %v105
  %v298 = vunpack.c.l.b16 %v106
  %v299 = vunpack.c.l.b16 %v107
  %v300 = vunpack.c.l.b16 %v108
  %v301 = vunpack.c.l.b16 %v109
  %v302 = vunpack.c.l.b16 %v110
  %v303 = vunpack.c.l.b16 %v111
  %v304 = vunpack.c.l.b16 %v112
  %v305 = vunpack.c.l.b16 %v113
  %v306 = vunpack.c.l.b16 %v114
  %v307 = vunpack.c.l.b16 %v115
  %v308 = vunpack.c.l.b16 %v116
  %v309 = vunpack.c.l.b16 %v117
  %v310 = vunpack.c.l.b16 %v118
  %v311 = vunpack.c.l.b16 %v119
  %v312 = vpack.c.b16 %v217, %v216
  %v313 = vpack.c.b16 %v219, %v218
  %v314 = vpack.c.b16 %v221, %v220
  %v315 = vpack.c.b16 %v223, %v222
  %v316 = vpack.c.b16 %v225, %v224
  %v317 = vpack.c.b16 %v227, %v226
  %v318 = vpack.c.b16 %v229, %v228
  %v319 = vpack.c.b16 %v231, %v230
  %v320 = vpack.c.b16 %v233, %v232
  %v321 = vpack.c.b16 %v235, %v234
  %v322 = vpack.c.b16 %v237, %v236
  %v323 = vpack.c.b16 %v239, %v238
  %v324 = vpack.c.b16 %v241, %v240
  %v325 = vpack.c.b16 %v243, %v242
  %v326 = vpack.c.b16 %v245, %v244
  %v327 = vpack.c.b16 %v247, %v246
  %v328 = vpack.c.b16 %v249, %v248
  %v329 = vpack.c.b16 %v251, %v250
  %v330 = vpack.c.b16 %v253, %v252
  %v331 = vpack.c.b16 %v255, %v254
  %v332 = vpack.c.b16 %v257, %v256
  %v333 = vpack.c.b16 %v259, %v258
  %v334 = vpack.c.b16 %v261, %v260
  %v335 = vpack.c.b16 %v263, %v262
  %v336 = vpack.c.b16 %v265, %v264
  %v337 = vpack.c.b16 %v267, %v266
  %v338 = vpack.c.b16 %v269, %v268
  %v339 = vpack.c.b16 %v271, %v270
  %v340 = vpack.c.b16 %v273, %v272
  %v341 = vpack.c.b16 %v275, %v274
  %v342 = vpack.c.b16 %v277, %v276
  %v343 = vpack.c.b16 %v279, %v278
  %v344 = vpack.c.b16 %v281, %v280
  %v345 = vpack.c.b16 %v283, %v282
  %v346 = vpack.c.b16 %v285, %v284
  %v347 = vpack.c.b16 %v287, %v286
  %v348 = vpack.c.b16 %v289, %v288
  %v349 = vpack.c.b16 %v291, %v290
  %v350 = vpack.c.b16 %v293, %v292
  %v351 = vpack.c.b16 %v295, %v294
  %v352 = vpack.c.b16 %v297, %v296
  %v353 = vpack.c.b16 %v299, %v298
  %v354 = vpack.c.b16 %v301, %v300
  %v355 = vpack.c.b16 %v303, %v302
  %v356 = vpack.c.b16 %v305, %v304
  %v357 = vpack.c.b16 %v307, %v306
  %v358 = vpack.c.b16 %v309, %v308
  %v359 = vpack.c.b16 %v311, %v310
  %408 = vmatprep.subr.bf16.mxu0 0
  %409 = vmatpush1.bf16.msra.mxu0 %v312
  %410 = vmatprep.subr.bf16.mxu0 0
  %411 = vmatpush1.bf16.msra.mxu0 %v313
  %412 = vmatprep.subr.bf16.mxu0 0
  %413 = vmatpush1.bf16.msra.mxu0 %v314
  %414 = vmatprep.subr.bf16.mxu0 0
  %415 = vmatpush1.bf16.msra.mxu0 %v315
  %416 = vmatprep.subr.bf16.mxu0 0
  %417 = vmatpush1.bf16.msra.mxu0 %v316
  %418 = vmatprep.subr.bf16.mxu0 0
  %419 = vmatpush1.bf16.msra.mxu0 %v317
  %420 = vmatprep.subr.bf16.mxu0 0
  %421 = vmatpush1.bf16.msra.mxu0 %v318
  %422 = vmatprep.subr.bf16.mxu0 0
  %423 = vmatpush1.bf16.msra.mxu0 %v319
  %424 = vmatprep.subr.bf16.mxu0 0
  %425 = vmatpush1.bf16.msra.mxu0 %v320
  %426 = vmatprep.subr.bf16.mxu0 0
  %427 = vmatpush1.bf16.msra.mxu0 %v321
  %428 = vmatprep.subr.bf16.mxu0 0
  %429 = vmatpush1.bf16.msra.mxu0 %v322
  %430 = vmatprep.subr.bf16.mxu0 0
  %431 = vmatpush1.bf16.msra.mxu0 %v323
  %432 = vmatprep.subr.bf16.mxu0 0
  %433 = vmatpush1.bf16.msra.mxu0 %v324
  %434 = vmatprep.subr.bf16.mxu0 0
  %435 = vmatpush1.bf16.msra.mxu0 %v325
  %436 = vmatprep.subr.bf16.mxu0 0
  %437 = vmatpush1.bf16.msra.mxu0 %v326
  %438 = vmatprep.subr.bf16.mxu0 0
  %439 = vmatpush1.bf16.msra.mxu0 %v327
  %440 = vmatprep.mubr.bf16.mxu0 %v19
  %441 = vmatmul.mubr.bf16.gmra.mrb[0].mxu0 %v18
  %v442 = vpop.f32.mrb[0].mxu0
  %v443 = vadd.f32 0.0, %v442
  %v444 = vpop.f32.mrb[0].mxu0
  %v445 = vpop.f32.mrb[0].mxu0
  %v446 = vpop.f32.mrb[0].mxu0
  %447 = vdwg.mxu0
  %448 = vmatprep.subr.bf16.mxu0 0
  %449 = vmatpush1.bf16.msra.mxu0 %v328
  %450 = vmatprep.subr.bf16.mxu0 0
  %451 = vmatpush1.bf16.msra.mxu0 %v329
  %452 = vmatprep.subr.bf16.mxu0 0
  %453 = vmatpush1.bf16.msra.mxu0 %v330
  %454 = vmatprep.subr.bf16.mxu0 0
  %455 = vmatpush1.bf16.msra.mxu0 %v331
  %456 = vmatprep.subr.bf16.mxu0 0
  %457 = vmatpush1.bf16.msra.mxu0 %v332
  %458 = vmatprep.subr.bf16.mxu0 0
  %459 = vmatpush1.bf16.msra.mxu0 %v333
  %460 = vmatprep.subr.bf16.mxu0 0
  %461 = vmatpush1.bf16.msra.mxu0 %v334
  %462 = vmatprep.subr.bf16.mxu0 0
  %463 = vmatpush1.bf16.msra.mxu0 %v335
  %464 = vmatprep.subr.bf16.mxu0 0
  %465 = vmatpush1.bf16.msra.mxu0 %v336
  %466 = vmatprep.subr.bf16.mxu0 0
  %467 = vmatpush1.bf16.msra.mxu0 %v337
  %468 = vmatprep.subr.bf16.mxu0 0
  %469 = vmatpush1.bf16.msra.mxu0 %v338
  %470 = vmatprep.subr.bf16.mxu0 0
  %471 = vmatpush1.bf16.msra.mxu0 %v339
  %472 = vmatprep.subr.bf16.mxu0 0
  %473 = vmatpush1.bf16.msra.mxu0 %v340
  %474 = vmatprep.subr.bf16.mxu0 0
  %475 = vmatpush1.bf16.msra.mxu0 %v341
  %476 = vmatprep.subr.bf16.mxu0 0
  %477 = vmatpush1.bf16.msra.mxu0 %v342
  %478 = vmatprep.subr.bf16.mxu0 0
  %479 = vmatpush1.bf16.msra.mxu0 %v343
  %480 = vmatprep.mubr.bf16.mxu0 %v21
  %481 = vmatmul.mubr.bf16.gmra.mrb[0].mxu0 %v20
  %v482 = vpop.f32.mrb[0].mxu0
  %v483 = vadd.f32 %v443, %v482
  %v484 = vpop.f32.mrb[0].mxu0
  %v485 = vpop.f32.mrb[0].mxu0
  %v486 = vpop.f32.mrb[0].mxu0
  %487 = vdwg.mxu0
  %488 = vmatprep.subr.bf16.mxu0 0
  %489 = vmatpush1.bf16.msra.mxu0 %v344
  %490 = vmatprep.subr.bf16.mxu0 0
  %491 = vmatpush1.bf16.msra.mxu0 %v345
  %492 = vmatprep.subr.bf16.mxu0 0
  %493 = vmatpush1.bf16.msra.mxu0 %v346
  %494 = vmatprep.subr.bf16.mxu0 0
  %495 = vmatpush1.bf16.msra.mxu0 %v347
  %496 = vmatprep.subr.bf16.mxu0 0
  %497 = vmatpush1.bf16.msra.mxu0 %v348
  %498 = vmatprep.subr.bf16.mxu0 0
  %499 = vmatpush1.bf16.msra.mxu0 %v349
  %500 = vmatprep.subr.bf16.mxu0 0
  %501 = vmatpush1.bf16.msra.mxu0 %v350
  %502 = vmatprep.subr.bf16.mxu0 0
  %503 = vmatpush1.bf16.msra.mxu0 %v351
  %504 = vmatprep.subr.bf16.mxu0 0
  %505 = vmatpush1.bf16.msra.mxu0 %v352
  %506 = vmatprep.subr.bf16.mxu0 0
  %507 = vmatpush1.bf16.msra.mxu0 %v353
  %508 = vmatprep.subr.bf16.mxu0 0
  %509 = vmatpush1.bf16.msra.mxu0 %v354
  %510 = vmatprep.subr.bf16.mxu0 0
  %511 = vmatpush1.bf16.msra.mxu0 %v355
  %512 = vmatprep.subr.bf16.mxu0 0
  %513 = vmatpush1.bf16.msra.mxu0 %v356
  %514 = vmatprep.subr.bf16.mxu0 0
  %515 = vmatpush1.bf16.msra.mxu0 %v357
  %516 = vmatprep.subr.bf16.mxu0 0
  %517 = vmatpush1.bf16.msra.mxu0 %v358
  %518 = vmatprep.subr.bf16.mxu0 0
  %519 = vmatpush1.bf16.msra.mxu0 %v359
  %520 = vmatprep.mubr.bf16.mxu0 %v23
  %521 = vmatmul.mubr.bf16.gmra.mrb[0].mxu0 %v22
  %v522 = vpop.f32.mrb[0].mxu0
  %v523 = vadd.f32 %v483, %v522
  %v524 = vpop.f32.mrb[0].mxu0
  %v525 = vpop.f32.mrb[0].mxu0
  %v526 = vpop.f32.mrb[0].mxu0
  %527 = vdwg.mxu0
  %vm528 = vcmask 15360
  %529 = vst.msk [vmem:[%s2] sm:$0xff] %vm528, %v523
  // Predicated region
  $region10: #{tpu_custom_call.1} parent=0 // pred_check
    _
  $region11: #{tpu_custom_call.1} parent=0 // pred_check_branch
    %531 = sbr.rel (0) target = $region13
  $region12: #{tpu_custom_call.1} parent=0 // pred_region
    _
  $region13: #{tpu_custom_call.1} parent=0 // pred_fallthru
    _
  // Predicated region
  $region14: #{tpu_custom_call.1} parent=0 // pred_check
    _
  $region15: #{tpu_custom_call.1} parent=0 // pred_check_branch
    %533 = sbr.rel (0) target = $region17
  $region16: #{tpu_custom_call.1} parent=0 // pred_region
    _
  $region17: #{tpu_custom_call.1} parent=0 // pred_fallthru
    _

</llo_original>
